<compile_context>
chip_gen: v7x
topology: tpu7x:2x2x1
jax: 0.10.0
libtpu: 0.0.40
codegen_flags: <defaults>
</compile_context>

<pallas_src>
import functools

import numpy as np
import jax
import jax.numpy as jnp
from jax.experimental import pallas as pl
from jax.experimental.pallas import tpu as pltpu


# ----------------------------------------------------------------------------
# Fused conv + folded-BN + LeakyReLU kernel (stride 1)
# ----------------------------------------------------------------------------
def _conv_bn_lrelu_kernel(x_ref, w_ref, shift_ref, o_ref, *,
                          k, tile_h, wo, wp, cout):
    # x_ref    : (1, 1, Cin, SLAB)     one row slab: tile_h + k - 1 padded input
    #                                  rows, row pitch Wp, flattened + zero tail
    # w_ref    : (Cout, Cin*k*k)       BN-scale-folded weights (tap-major, cin-minor)
    # shift_ref: (Cout, 1)             folded BN shift (f32)
    # o_ref    : (1, Cout, tile_h*Wo)  flattened NCHW output row tile
    L = tile_h * wp

    # Each tap is a static, contiguous lane slice of the flat slab.
    taps = []
    for ky in range(k):
        for kx in range(k):
            taps.append(x_ref[0, 0, :, pl.ds(ky * wp + kx, L)])     # (Cin, L)
    xmat = taps[0] if len(taps) == 1 else jnp.concatenate(taps, axis=0)

    # Single MXU push per tile: (Cout, Cin*k*k) @ (Cin*k*k, L), f32 accumulate.
    acc = jnp.dot(w_ref[...], xmat, preferred_element_type=jnp.float32)

    z = acc + shift_ref[...]                  # folded BatchNorm shift
    y = jnp.where(z > 0, z, 0.1 * z)          # LeakyReLU(negative_slope=0.1)

    if wp == wo:                              # k == 1: already lane-dense
        o_ref[0] = y.astype(o_ref.dtype)
    else:
        # Strip the k-1 wrap-around columns per row once per tile (on the
        # Cout-row accumulator, instead of k*k relayouts on the Cin-row input).
        y = y.reshape(cout, tile_h, wp)[:, :, :wo].reshape(cout, tile_h * wo)
        o_ref[0] = y.astype(o_ref.dtype)


def _pick_tile_h(ho, wo, max_lanes=16384):
    # Largest row tile that divides Ho, keeps the flattened output block a
    # multiple of 128 lanes (unmasked stores), leaves >= 2 tiles so the input
    # slabs / output tiles pipeline, and bounds the per-step lane extent.
    for th in range(ho // 2, 0, -1):
        if ho % th == 0 and (th * wo) % 128 == 0 and th * wo <= max_lanes:
            return th
    # TODO(synk): cdiv + masked tail for Ho with no suitable divisor; fall back
    # to one full-height tile (block == full spatial dim, always layout-legal).
    return ho


def _fused_conv_s1(x, w, bn_scale, bn_shift, padding):
    """Stride-1 fused Conv + BN(eval) + LeakyReLU.  x: (N,Cin,H,W) NCHW."""
    n, cin, h, w_in = x.shape
    cout, cin2, kh, kw = w.shape
    assert kh == kw and cin2 == cin
    k = kh
    hp, wp = h + 2 * padding, w_in + 2 * padding
    ho, wo = hp - k + 1, wp - k + 1

    # Fold the BN scale into the conv weights; flatten taps (ky, kx, cin) on
    # the contraction axis.  Weights take the activation dtype (bf16-ready).
    w32 = w.astype(jnp.float32) * bn_scale.astype(jnp.float32)[:, None, None, None]
    w2 = jnp.transpose(w32, (0, 2, 3, 1)).reshape(cout, k * k * cin).astype(x.dtype)
    shift = bn_shift.astype(jnp.float32).reshape(cout, 1)

    tile_h = _pick_tile_h(ho, wo)
    nrt = ho // tile_h                          # number of output row tiles
    rows_in = tile_h + k - 1                    # input rows per tile (halo)
    slab = rows_in * wp + (k - 1)               # flat slab incl. tap overhang
    slab = -(-slab // 128) * 128                # lane-align the slab length

    # Pre-gather per-tile row slabs (pitch Wp, flattened) so in-kernel tap
    # slices are static and the per-step input block is bounded.
    # TODO(synk): fold the zero padding into the slab gather (skip jnp.pad) to
    # save one HBM round trip of x on bandwidth-limited parts (v5e).
    x_pad = jnp.pad(x, ((0, 0), (0, 0), (padding, padding), (padding, padding)))
    row_idx = np.arange(nrt)[:, None] * tile_h + np.arange(rows_in)[None, :]
    x_slab = x_pad[:, :, row_idx, :]                              # (N,Cin,R,rows_in,Wp)
    x_slab = jnp.transpose(x_slab, (0, 2, 1, 3, 4)).reshape(n, nrt, cin, rows_in * wp)
    x_slab = jnp.pad(x_slab, ((0, 0), (0, 0), (0, 0), (0, slab - rows_in * wp)))

    # Explicit VMEM budget: double-buffered input slab + output tile, resident
    # weights/shift, in-kernel X / acc values, plus slack.
    es = x.dtype.itemsize
    need = (2 * cin * slab * es + 2 * cout * tile_h * wo * es
            + cout * k * k * cin * es + cout * 4
            + k * k * cin * tile_h * wp * es + cout * tile_h * wp * 4
            + (2 << 20))
    vmem_limit = int(min(max(need, 4 << 20), 64 << 20))

    # TODO(synk): for large Cin/Cout (512-1024 in real YOLO layers) add Cin/Cout
    # grid axes with blocked weight specs instead of keeping W fully resident.
    kernel = functools.partial(_conv_bn_lrelu_kernel, k=k, tile_h=tile_h,
                               wo=wo, wp=wp, cout=cout)
    out_flat = pl.pallas_call(
        kernel,
        out_shape=jax.ShapeDtypeStruct((n, cout, ho * wo), x.dtype),
        grid=(n, nrt),
        in_specs=[
            # One row slab per (batch, row-tile) step: bounded + pipelined.
            pl.BlockSpec((1, 1, cin, slab), lambda b, r: (b, r, 0, 0)),
            # Weights / shift: resident across the whole grid.
            pl.BlockSpec((cout, k * k * cin), lambda b, r: (0, 0)),
            pl.BlockSpec((cout, 1), lambda b, r: (0, 0)),
        ],
        out_specs=pl.BlockSpec((1, cout, tile_h * wo), lambda b, r: (b, 0, r)),
        compiler_params=pltpu.CompilerParams(
            dimension_semantics=("parallel", "parallel"),
            vmem_limit_bytes=vmem_limit),
    )(x_slab, w2, shift)
    return out_flat.reshape(n, cout, ho, wo)


@functools.partial(jax.jit, static_argnames=("stride", "padding"))
def conv_bn_lrelu(x, w, bn_scale, bn_shift, *, stride, padding):
    """Fused Conv2d(bias=False) + BatchNorm2d(inference) + LeakyReLU(0.1).

    x: (N, Cin, H, W), w: (Cout, Cin, k, k), bn_scale/bn_shift: (Cout,).
    Returns (N, Cout, Ho, Wo) in NCHW with the same dtype as x.
    """
    if stride == 1:
        return _fused_conv_s1(x, w, bn_scale, bn_shift, padding)
    # TODO(synk): dedicated stride>1 kernel (phase decomposition / strided ref
    # loads); for now run the validated stride-1 kernel and subsample in the
    # wrapper -- exact semantics, but does stride^2 redundant compute.
    y = _fused_conv_s1(x, w, bn_scale, bn_shift, padding)
    return y[:, :, ::stride, ::stride]


# ----------------------------------------------------------------------------
# Pure-JAX/XLA reference (independent code path) for correctness self-checks
# ----------------------------------------------------------------------------
def _reference(x, w, bn_scale, bn_shift, *, stride, padding):
    z = jax.lax.conv_general_dilated(
        x.astype(jnp.float32), w.astype(jnp.float32),
        window_strides=(stride, stride),
        padding=((padding, padding), (padding, padding)),
        dimension_numbers=("NCHW", "OIHW", "NCHW"))
    z = z * bn_scale[None, :, None, None] + bn_shift[None, :, None, None]
    return jnp.where(z > 0, z, 0.1 * z)


if __name__ == "__main__":
    # ConvLayer_BN(in_channels=4, out_channels=8, kernel_size=3, stride=1, padding=1)
    N, Cin, H, W = 2, 4, 16, 16
    Cout, K, S, P = 8, 3, 1, 1

    key = jax.random.PRNGKey(0)
    kx, kw, kg, kb, km, kv = jax.random.split(key, 6)

    x = jax.random.normal(kx, (N, Cin, H, W), dtype=jnp.float32)
    w = jax.random.normal(kw, (Cout, Cin, K, K), dtype=jnp.float32) * 0.1

    # BatchNorm2d(Cout) inference parameters, folded to scale/shift.
    # TODO(synk): training-mode BN (batch statistics + running-stat updates) is
    # out of scope for this fused inference kernel.
    gamma = 1.0 + 0.1 * jax.random.normal(kg, (Cout,), dtype=jnp.float32)
    beta = 0.1 * jax.random.normal(kb, (Cout,), dtype=jnp.float32)
    running_mean = 0.1 * jax.random.normal(km, (Cout,), dtype=jnp.float32)
    running_var = 1.0 + 0.1 * jax.random.uniform(kv, (Cout,), dtype=jnp.float32)
    eps = 1e-5
    bn_scale = gamma / jnp.sqrt(running_var + eps)
    bn_shift = beta - running_mean * bn_scale

    # 1) 3x3 / stride 1 / pad 1.
    out = jax.block_until_ready(
        conv_bn_lrelu(x, w, bn_scale, bn_shift, stride=S, padding=P))
    ref = _reference(x, w, bn_scale, bn_shift, stride=S, padding=P)
    assert out.shape == (N, Cout, H, W), out.shape
    assert jnp.allclose(out, ref, rtol=1e-3, atol=1e-3), \
        float(jnp.max(jnp.abs(out - ref)))

    # 2) 1x1 / stride 1 / pad 0 (common in YOLO bottlenecks).
    w1 = jax.random.normal(kw, (Cout, Cin, 1, 1), dtype=jnp.float32) * 0.1
    out1 = jax.block_until_ready(
        conv_bn_lrelu(x, w1, bn_scale, bn_shift, stride=1, padding=0))
    ref1 = _reference(x, w1, bn_scale, bn_shift, stride=1, padding=0)
    assert out1.shape == (N, Cout, H, W), out1.shape
    assert jnp.allclose(out1, ref1, rtol=1e-3, atol=1e-3), \
        float(jnp.max(jnp.abs(out1 - ref1)))

    # 3) 3x3 / stride 2 / pad 1 (downsampling layer; wrapper subsample path).
    out2 = jax.block_until_ready(
        conv_bn_lrelu(x, w, bn_scale, bn_shift, stride=2, padding=1))
    ref2 = _reference(x, w, bn_scale, bn_shift, stride=2, padding=1)
    assert out2.shape == (N, Cout, H // 2, W // 2), out2.shape
    assert jnp.allclose(out2, ref2, rtol=1e-3, atol=1e-3), \
        float(jnp.max(jnp.abs(out2 - ref2)))

    # 4) bf16 activations -> bf16 weights on the MXU with f32 accumulation.
    outb = jax.block_until_ready(
        conv_bn_lrelu(x.astype(jnp.bfloat16), w, bn_scale, bn_shift,
                      stride=S, padding=P))
    assert outb.dtype == jnp.bfloat16 and outb.shape == (N, Cout, H, W)
    assert jnp.allclose(outb.astype(jnp.float32), ref, rtol=5e-2, atol=5e-2), \
        float(jnp.max(jnp.abs(outb.astype(jnp.float32) - ref)))

    print("KERNEL_OK")
</pallas_src>

<mosaic_0001>
module attributes {stable_mosaic.version = 11 : i64} {
  func.func @_conv_bn_lrelu_kernel(%arg0: i32, %arg1: i32, %arg2: memref<1x1x4x256xf32, #tpu.memory_space<vmem>>, %arg3: memref<8x36xf32, #tpu.memory_space<vmem>>, %arg4: memref<8x1xf32, #tpu.memory_space<vmem>>, %arg5: memref<1x8x128xf32, #tpu.memory_space<vmem>>) attributes {dimension_semantics = [#tpu.dimension_semantics<parallel>, #tpu.dimension_semantics<parallel>], iteration_bounds = array<i64: 2, 2>, scalar_prefetch = 0 : i64, scratch_operands = 0 : i64, tpu.core_type = #tpu.core_type<tc>, window_params = [{transform_indices = @transform_0, window_bounds = array<i64: 1, 1, 4, 256>}, {pipeline_mode = #tpu.pipeline_mode<synchronous>, transform_indices = @transform_1, window_bounds = array<i64: 8, 36>}, {pipeline_mode = #tpu.pipeline_mode<synchronous>, transform_indices = @transform_2, window_bounds = array<i64: 8, 1>}, {transform_indices = @transform_3, window_bounds = array<i64: 1, 8, 128>}]} {
    %c0 = arith.constant 0 : index
    %c0_0 = arith.constant 0 : index
    %c0_1 = arith.constant 0 : index
    %c0_2 = arith.constant 0 : index
    %0 = vector.load %arg2[%c0, %c0_0, %c0_1, %c0_2] : memref<1x1x4x256xf32, #tpu.memory_space<vmem>>, vector<1x1x4x144xf32>
    %1 = vector.shape_cast %0 : vector<1x1x4x144xf32> to vector<4x144xf32>
    %c0_3 = arith.constant 0 : index
    %c0_4 = arith.constant 0 : index
    %c0_5 = arith.constant 0 : index
    %c1 = arith.constant 1 : index
    %2 = vector.load %arg2[%c0_3, %c0_4, %c0_5, %c1] : memref<1x1x4x256xf32, #tpu.memory_space<vmem>>, vector<1x1x4x144xf32>
    %3 = vector.shape_cast %2 : vector<1x1x4x144xf32> to vector<4x144xf32>
    %c0_6 = arith.constant 0 : index
    %c0_7 = arith.constant 0 : index
    %c0_8 = arith.constant 0 : index
    %c2 = arith.constant 2 : index
    %4 = vector.load %arg2[%c0_6, %c0_7, %c0_8, %c2] : memref<1x1x4x256xf32, #tpu.memory_space<vmem>>, vector<1x1x4x144xf32>
    %5 = vector.shape_cast %4 : vector<1x1x4x144xf32> to vector<4x144xf32>
    %c0_9 = arith.constant 0 : index
    %c0_10 = arith.constant 0 : index
    %c0_11 = arith.constant 0 : index
    %c18 = arith.constant 18 : index
    %6 = vector.load %arg2[%c0_9, %c0_10, %c0_11, %c18] : memref<1x1x4x256xf32, #tpu.memory_space<vmem>>, vector<1x1x4x144xf32>
    %7 = vector.shape_cast %6 : vector<1x1x4x144xf32> to vector<4x144xf32>
    %c0_12 = arith.constant 0 : index
    %c0_13 = arith.constant 0 : index
    %c0_14 = arith.constant 0 : index
    %c19 = arith.constant 19 : index
    %8 = vector.load %arg2[%c0_12, %c0_13, %c0_14, %c19] : memref<1x1x4x256xf32, #tpu.memory_space<vmem>>, vector<1x1x4x144xf32>
    %9 = vector.shape_cast %8 : vector<1x1x4x144xf32> to vector<4x144xf32>
    %c0_15 = arith.constant 0 : index
    %c0_16 = arith.constant 0 : index
    %c0_17 = arith.constant 0 : index
    %c20 = arith.constant 20 : index
    %10 = vector.load %arg2[%c0_15, %c0_16, %c0_17, %c20] : memref<1x1x4x256xf32, #tpu.memory_space<vmem>>, vector<1x1x4x144xf32>
    %11 = vector.shape_cast %10 : vector<1x1x4x144xf32> to vector<4x144xf32>
    %c0_18 = arith.constant 0 : index
    %c0_19 = arith.constant 0 : index
    %c0_20 = arith.constant 0 : index
    %c36 = arith.constant 36 : index
    %12 = vector.load %arg2[%c0_18, %c0_19, %c0_20, %c36] : memref<1x1x4x256xf32, #tpu.memory_space<vmem>>, vector<1x1x4x144xf32>
    %13 = vector.shape_cast %12 : vector<1x1x4x144xf32> to vector<4x144xf32>
    %c0_21 = arith.constant 0 : index
    %c0_22 = arith.constant 0 : index
    %c0_23 = arith.constant 0 : index
    %c37 = arith.constant 37 : index
    %14 = vector.load %arg2[%c0_21, %c0_22, %c0_23, %c37] : memref<1x1x4x256xf32, #tpu.memory_space<vmem>>, vector<1x1x4x144xf32>
    %15 = vector.shape_cast %14 : vector<1x1x4x144xf32> to vector<4x144xf32>
    %c0_24 = arith.constant 0 : index
    %c0_25 = arith.constant 0 : index
    %c0_26 = arith.constant 0 : index
    %c38 = arith.constant 38 : index
    %16 = vector.load %arg2[%c0_24, %c0_25, %c0_26, %c38] : memref<1x1x4x256xf32, #tpu.memory_space<vmem>>, vector<1x1x4x144xf32>
    %17 = vector.shape_cast %16 : vector<1x1x4x144xf32> to vector<4x144xf32>
    %18 = tpu.concatenate %1, %3, %5, %7, %9, %11, %13, %15, %17 in 0 : vector<4x144xf32>, vector<4x144xf32>, vector<4x144xf32>, vector<4x144xf32>, vector<4x144xf32>, vector<4x144xf32>, vector<4x144xf32>, vector<4x144xf32>, vector<4x144xf32> -> vector<36x144xf32>
    %c0_27 = arith.constant 0 : index
    %c0_28 = arith.constant 0 : index
    %19 = vector.load %arg3[%c0_27, %c0_28] : memref<8x36xf32, #tpu.memory_space<vmem>>, vector<8x36xf32>
    %cst = arith.constant dense<0.000000e+00> : vector<8x144xf32>
    %20 = tpu.matmul %19, %18, %cst {dimension_numbers = #tpu.dot_dimension_numbers<[1], [0], [0], [1], [0, 0, 1, 1], [], []>} : vector<8x36xf32>, vector<36x144xf32>, vector<8x144xf32> -> vector<8x144xf32>
    %c0_29 = arith.constant 0 : index
    %c0_30 = arith.constant 0 : index
    %21 = vector.load %arg4[%c0_29, %c0_30] : memref<8x1xf32, #tpu.memory_space<vmem>>, vector<8x1xf32>
    %22 = vector.broadcast %21 : vector<8x1xf32> to vector<8x144xf32>
    %23 = arith.addf %20, %22 : vector<8x144xf32>
    %cst_31 = arith.constant 0.000000e+00 : f32
    %24 = vector.broadcast %cst_31 : f32 to vector<8x144xf32>
    %25 = arith.cmpf ogt, %23, %24 : vector<8x144xf32>
    %cst_32 = arith.constant 1.000000e-01 : f32
    %26 = vector.broadcast %cst_32 : f32 to vector<8x144xf32>
    %27 = arith.mulf %26, %23 : vector<8x144xf32>
    %28 = arith.select %25, %23, %27 : vector<8x144xi1>, vector<8x144xf32>
    %29 = vector.shape_cast %28 : vector<8x144xf32> to vector<8x8x18xf32>
    %30 = vector.extract_strided_slice %29 {offsets = [0, 0, 0], sizes = [8, 8, 16], strides = [1, 1, 1]} : vector<8x8x18xf32> to vector<8x8x16xf32>
    %31 = vector.shape_cast %30 : vector<8x8x16xf32> to vector<8x128xf32>
    %c0_33 = arith.constant 0 : index
    %c0_34 = arith.constant 0 : index
    %c0_35 = arith.constant 0 : index
    %32 = vector.load %arg5[%c0_33, %c0_34, %c0_35] : memref<1x8x128xf32, #tpu.memory_space<vmem>>, vector<1x8x128xf32>
    %33 = vector.shape_cast %32 : vector<1x8x128xf32> to vector<8x128xf32>
    %34 = vector.shape_cast %31 : vector<8x128xf32> to vector<1x8x128xf32>
    tpu.vector_store %arg5[%c0_33, %c0_34, %c0_35], %34 {strides = array<i32>} : memref<1x8x128xf32, #tpu.memory_space<vmem>>, vector<1x8x128xf32>,
    return
  }
  func.func @transform_0(%arg0: i32, %arg1: i32) -> (i32, i32, i32, i32) {
    %c0_i32 = arith.constant 0 : i32
    %c0_i32_0 = arith.constant 0 : i32
    %c0_i32_1 = arith.constant 0 : i32
    return %arg0, %arg1, %c0_i32, %c0_i32_0 : i32, i32, i32, i32
  }
  func.func @transform_1(%arg0: i32, %arg1: i32) -> (i32, i32) {
    %c0_i32 = arith.constant 0 : i32
    %c0_i32_0 = arith.constant 0 : i32
    %c0_i32_1 = arith.constant 0 : i32
    return %c0_i32, %c0_i32_0 : i32, i32
  }
  func.func @transform_2(%arg0: i32, %arg1: i32) -> (i32, i32) {
    %c0_i32 = arith.constant 0 : i32
    %c0_i32_0 = arith.constant 0 : i32
    %c0_i32_1 = arith.constant 0 : i32
    return %c0_i32, %c0_i32_0 : i32, i32
  }
  func.func @transform_3(%arg0: i32, %arg1: i32) -> (i32, i32, i32) {
    %c0_i32 = arith.constant 0 : i32
    %c0_i32_0 = arith.constant 0 : i32
    return %arg0, %c0_i32, %arg1 : i32, i32, i32
  }
}

</mosaic_0001>

<llo_original>
// kernel: conv_bn_lrelu.1
$region0: #{conv_bn_lrelu.1}
  #allocation0 [shape = 'u32[]', space=smem, size = 0x4, offset = 0x4, fixed_abs, tag = 'smem constant byte address 0x4 - core index']
  #allocation1 [shape = 'u32[144,128]{1,0:T(1,128)}', space=vmem, size = 0x12000, scoped, tag = 'internal scratch']
  %s0 = inlined_call_operand.vmem [shape: f32[2,2,4,256], index: 0, kind: input, shape index: {}]
  %s1 = inlined_call_operand.vmem [shape: f32[8,36], index: 1, kind: input, shape index: {}]
  %s2 = inlined_call_operand.vmem [shape: f32[8,1], index: 2, kind: input, shape index: {}]
  %s3 = inlined_call_operand.vmem [shape: f32[2,8,256], index: 3, kind: output, shape index: {}]
  %s4 = sld [smem:[#allocation0]]
  $region45: #{conv_bn_lrelu.1} parent=0
    _
  %s6 = ssub.s32 1, %s4
  %s7 = scalar_select 0, %s6, %s4
  loop: start=0, step=1, limit=6
  $region2: #{conv_bn_lrelu.1} parent=0 // loop_pre_header
    _
  $region3: #{conv_bn_lrelu.1} parent=0 // loop_header
    %s9 = sphi 0, %s13
    %p10 = scmp.ge.s32.totalorder %s9, 6
    %s16 = sphi 0, %s28
    %s17 = sphi 0, %s24
    %s18 = sphi 0, %s16
    %s19 = sphi 0, %s17
    %s20 = sphi 0, %s18
    %s21 = sphi 0, %s19
    %s33 = sphi 0, %s35
    %s36 = sphi 0, %s33
    %s37 = sphi 0, %s36
    %s53 = sphi 0, %s37
    %s57 = sphi 0, %s57
    %s59 = sphi 0, %s57
    %s60 = sphi 0, %s59
    %s74 = sphi 0, %s60
    %s78 = sphi 0, %s78
    %s80 = sphi 0, %s78
    %s81 = sphi 0, %s80
    %s95 = sphi 0, %s81
    %s103 = sphi 0, %s105
    %s106 = sphi 0, %s103
    %s107 = sphi 0, %s106
    %s123 = sphi 0, %s107
  $region4: #{conv_bn_lrelu.1} parent=0 // loop_header_branch
    %12 = sbr.rel (%p10) target = $region8
  $region5: #{conv_bn_lrelu.1} parent=0 // loop_body
    %s14 = ssub.s32 %s9, 1
    %s15 = ssub.s32 %s9, 2
    %s22 = sadd.s32 1, %s17
    %p23 = scmp.ge.s32.totalorder %s22, 2
    %s24 = scalar_select %p23, 0, %s22
    %s25 = sadd.s32 1, %s16
    %s26 = scalar_select %p23, %s25, %s16
    %p27 = scmp.ge.s32.totalorder %s26, 2
    %s28 = scalar_select %p27, 0, %s26
    %s29 = ssub.s32 %s16, %s28
    %s30 = ssub.s32 %s17, %s24
    %s31 = sor.u32 %s29, %s30
    %p32 = scmp.eq.s32.totalorder %s31, 0
    %s34 = sadd.s32 %s33, 1
    %s35 = scalar_select %p32, %s33, %s34
    %p38 = pneg %p32
    %p39 = scmp.eq.s32.totalorder %s9, 3
    %p40 = por %p38, %p39
    %p41 = scmp.ne.s32.totalorder %s33, %s36
    %p42 = scmp.eq.s32.totalorder %s9, 0
    %p43 = por %p41, %p42
    %p44 = scmp.ne.s32.totalorder %s33, %s36
    %p45 = scmp.eq.s32.totalorder %s14, 3
    %p46 = por %p44, %p45
    %p47 = scmp.ne.s32.totalorder %s36, %s37
    %p48 = scmp.eq.s32.totalorder %s14, 0
    %p49 = por %p47, %p48
    %p50 = scmp.ne.s32.totalorder %s36, %s37
    %p51 = scmp.eq.s32.totalorder %s15, 3
    %p52 = por %p50, %p51
    %p54 = scmp.ne.s32.totalorder %s37, %s53
    %p55 = scmp.eq.s32.totalorder %s15, 0
    %p56 = por %p54, %p55
    %s58 = sadd.s32 %s57, 1
    %p61 = scmp.eq.s32.totalorder %s9, 3
    %p62 = scmp.ne.s32.totalorder %s57, %s59
    %p63 = scmp.eq.s32.totalorder %s9, 0
    %p64 = por %p62, %p63
    %p65 = scmp.ne.s32.totalorder %s57, %s59
    %p66 = scmp.eq.s32.totalorder %s14, 3
    %p67 = por %p65, %p66
    %p68 = scmp.ne.s32.totalorder %s59, %s60
    %p69 = scmp.eq.s32.totalorder %s14, 0
    %p70 = por %p68, %p69
    %p71 = scmp.ne.s32.totalorder %s59, %s60
    %p72 = scmp.eq.s32.totalorder %s15, 3
    %p73 = por %p71, %p72
    %p75 = scmp.ne.s32.totalorder %s60, %s74
    %p76 = scmp.eq.s32.totalorder %s15, 0
    %p77 = por %p75, %p76
    %s79 = sadd.s32 %s78, 1
    %p82 = scmp.eq.s32.totalorder %s9, 3
    %p83 = scmp.ne.s32.totalorder %s78, %s80
    %p84 = scmp.eq.s32.totalorder %s9, 0
    %p85 = por %p83, %p84
    %p86 = scmp.ne.s32.totalorder %s78, %s80
    %p87 = scmp.eq.s32.totalorder %s14, 3
    %p88 = por %p86, %p87
    %p89 = scmp.ne.s32.totalorder %s80, %s81
    %p90 = scmp.eq.s32.totalorder %s14, 0
    %p91 = por %p89, %p90
    %p92 = scmp.ne.s32.totalorder %s80, %s81
    %p93 = scmp.eq.s32.totalorder %s15, 3
    %p94 = por %p92, %p93
    %p96 = scmp.ne.s32.totalorder %s81, %s95
    %p97 = scmp.eq.s32.totalorder %s15, 0
    %p98 = por %p96, %p97
    %s99 = ssub.s32 %s16, %s28
    %s100 = ssub.s32 %s17, %s24
    %s101 = sor.u32 %s99, %s100
    %p102 = scmp.eq.s32.totalorder %s101, 0
    %s104 = sadd.s32 %s103, 1
    %s105 = scalar_select %p102, %s103, %s104
    %p108 = pneg %p102
    %p109 = scmp.eq.s32.totalorder %s9, 3
    %p110 = por %p108, %p109
    %p111 = scmp.ne.s32.totalorder %s103, %s106
    %p112 = scmp.eq.s32.totalorder %s9, 0
    %p113 = por %p111, %p112
    %p114 = scmp.ne.s32.totalorder %s103, %s106
    %p115 = scmp.eq.s32.totalorder %s14, 3
    %p116 = por %p114, %p115
    %p117 = scmp.ne.s32.totalorder %s106, %s107
    %p118 = scmp.eq.s32.totalorder %s14, 0
    %p119 = por %p117, %p118
    %p120 = scmp.ne.s32.totalorder %s106, %s107
    %p121 = scmp.eq.s32.totalorder %s15, 3
    %p122 = por %p120, %p121
    %p124 = scmp.ne.s32.totalorder %s107, %s123
    %p125 = scmp.eq.s32.totalorder %s15, 0
    %p126 = por %p124, %p125
    %p127 = scmp.le.s32.totalorder 1, %s9
    %p128 = scmp.lt.s32.totalorder %s9, 5
    %p129 = pnand %p127, %p128
    %p130 = pneg %p129
    // Predicated region
    $region9: #{conv_bn_lrelu.1} parent=5 // pred_check
      _
    $region10: #{conv_bn_lrelu.1} parent=5 // pred_check_branch
      %132 = sbr.rel (%p129) target = $region12
    $region11: #{conv_bn_lrelu.1} parent=5 // pred_region
      %s133 = ssub.s32 %s9, 1
      // Predicated region
      $region13: #{conv_bn_lrelu.1} parent=11 // pred_check
        %p134 = pneg %p70
      $region14: #{conv_bn_lrelu.1} parent=11 // pred_check_branch
        %136 = sbr.rel (%p134) target = $region16
      $region15: #{conv_bn_lrelu.1} parent=11 // pred_region
        _
      $region16: #{conv_bn_lrelu.1} parent=11 // pred_fallthru
        _
      // Predicated region
      $region17: #{conv_bn_lrelu.1} parent=11 // pred_check
        %p137 = pneg %p91
      $region18: #{conv_bn_lrelu.1} parent=11 // pred_check_branch
        %139 = sbr.rel (%p137) target = $region20
      $region19: #{conv_bn_lrelu.1} parent=11 // pred_region
        _
      $region20: #{conv_bn_lrelu.1} parent=11 // pred_fallthru
        _
    $region12: #{conv_bn_lrelu.1} parent=5 // pred_fallthru
      _
    %p140 = scmp.lt.s32.totalorder %s9, 4
    // Predicated region
    $region21: #{conv_bn_lrelu.1} parent=5 // pred_check
      %p141 = pneg %p140
    $region22: #{conv_bn_lrelu.1} parent=5 // pred_check_branch
      %143 = sbr.rel (%p141) target = $region24
    $region23: #{conv_bn_lrelu.1} parent=5 // pred_region
      // Predicated region
      $region25: #{conv_bn_lrelu.1} parent=23 // pred_check
        %p144 = pneg %p43
      $region26: #{conv_bn_lrelu.1} parent=23 // pred_check_branch
        %146 = sbr.rel (%p144) target = $region28
      $region27: #{conv_bn_lrelu.1} parent=23 // pred_region
        %p147 = scmp.lt.s32.totalorder %s16, 1
        %s148 = scalar_select %p147, %s16, 1
        %p149 = scmp.lt.s32.totalorder %s17, 1
        %s150 = scalar_select %p149, %s17, 1
        %s151 = smul.addr %s150, 2
        %s152 = smul.addr %s148, 4
        %s153 = sadd.s32 %s151, %s152
        %s154 = smul.addr %s153, 4
        %s155 = scalar_lea.vmem %s0, %s154
      $region28: #{conv_bn_lrelu.1} parent=23 // pred_fallthru
        _
    $region24: #{conv_bn_lrelu.1} parent=5 // pred_fallthru
      _
    %p156 = scmp.le.s32.totalorder 1, %s9
    %p157 = scmp.lt.s32.totalorder %s9, 5
    %p158 = pnand %p156, %p157
    %p159 = pneg %p158
    // Predicated region
    $region29: #{conv_bn_lrelu.1} parent=5 // pred_check
      _
    $region30: #{conv_bn_lrelu.1} parent=5 // pred_check_branch
      %161 = sbr.rel (%p158) target = $region32
    $region31: #{conv_bn_lrelu.1} parent=5 // pred_region
      %s162 = ssub.s32 %s9, 1
      %p163 = scmp.lt.s32.totalorder %s18, 1
      %s164 = scalar_select %p163, %s18, 1
      %p165 = scmp.lt.s32.totalorder %s19, 1
      %s166 = scalar_select %p165, %s19, 1
      %s167 = smul.addr %s166, 2
      %s168 = smul.addr %s164, 4
      %s169 = sadd.s32 %s167, %s168
      %s170 = smul.addr %s169, 4
      %s171 = scalar_lea.vmem %s0, %s170
      %p172 = pneg %p49
      %p173 = pneg %p46
      %p174 = pneg %p70
      %p175 = pneg %p67
      %p176 = pneg %p91
      %p177 = pneg %p88
      %p178 = pneg %p119
      %p179 = pneg %p116
      %p180 = scmp.lt.s32.totalorder %s18, 1
      %s181 = scalar_select %p180, %s18, 1
      %p182 = scmp.lt.s32.totalorder %s19, 1
      %s183 = scalar_select %p182, %s19, 1
      %s184 = smul.addr %s181, 2
      %s185 = sadd.s32 %s183, %s184
      %s186 = smul.addr %s185, 8
      %s187 = scalar_lea.vmem %s3, %s186
      %p188 = scmp.lt.s32.totalorder %s18, 1
      %s189 = scalar_select %p188, %s18, 1
      %p190 = scmp.lt.s32.totalorder %s19, 1
      %s191 = scalar_select %p190, %s19, 1
      %s192 = smul.addr %s191, 2
      %s193 = smul.addr %s189, 4
      %s194 = sadd.s32 %s192, %s193
      %s195 = smul.addr %s194, 4
      %s196 = scalar_lea.vmem %s0, %s195
      %p197 = scmp.lt.s32.totalorder %s18, 1
      %s198 = scalar_select %p197, %s18, 1
      %p199 = scmp.lt.s32.totalorder %s19, 1
      %s200 = scalar_select %p199, %s19, 1
      %s201 = smul.addr %s198, 2
      %s202 = sadd.s32 %s200, %s201
      %s203 = smul.addr %s202, 8
      %s204 = scalar_lea.vmem %s3, %s203
      %v205 = vld [vmem:[%s196] sm:$0xff]
      %v207 = vcombine.high %v205, %v205
      %v209 = vcombine.low %v205, %v205
      %210 = vrot.lane.b32.xlu0 %v209, 127
      %v211 = vpop.permute.xlu0 %210
      %212 = vrot.lane.b32.xlu0 %v205, 127
      %v213 = vpop.permute.xlu0 %212
      %vm214 = vcmask 1039360
      %v215 = vsel %vm214, %v211, %v213
      %218 = vrot.lane.b32.xlu0 %v205, 126
      %v219 = vpop.permute.xlu0 %218
      %220 = vrot.lane.b32.xlu0 %v207, 126
      %v221 = vpop.permute.xlu0 %220
      %vm222 = vcmask 1031168
      %v223 = vsel %vm222, %v219, %v221
      %226 = vrot.lane.b32.xlu0 %v209, 110
      %v227 = vpop.permute.xlu0 %226
      %228 = vrot.lane.b32.xlu0 %v205, 110
      %v229 = vpop.permute.xlu0 %228
      %vm230 = vcmask 900096
      %v231 = vsel %vm230, %v227, %v229
      %234 = vrot.lane.b32.xlu0 %v205, 109
      %v235 = vpop.permute.xlu0 %234
      %236 = vrot.lane.b32.xlu0 %v207, 109
      %v237 = vpop.permute.xlu0 %236
      %vm238 = vcmask 891904
      %v239 = vsel %vm238, %v235, %v237
      %242 = vrot.lane.b32.xlu0 %v209, 108
      %v243 = vpop.permute.xlu0 %242
      %244 = vrot.lane.b32.xlu0 %v205, 108
      %v245 = vpop.permute.xlu0 %244
      %vm246 = vcmask 883712
      %v247 = vsel %vm246, %v243, %v245
      %250 = vrot.lane.b32.xlu0 %v205, 92
      %v251 = vpop.permute.xlu0 %250
      %252 = vrot.lane.b32.xlu0 %v207, 92
      %v253 = vpop.permute.xlu0 %252
      %vm254 = vcmask 752640
      %v255 = vsel %vm254, %v251, %v253
      %258 = vrot.lane.b32.xlu0 %v209, 91
      %v259 = vpop.permute.xlu0 %258
      %260 = vrot.lane.b32.xlu0 %v205, 91
      %v261 = vpop.permute.xlu0 %260
      %vm262 = vcmask 744448
      %v263 = vsel %vm262, %v259, %v261
      %266 = vrot.lane.b32.xlu0 %v205, 90
      %v267 = vpop.permute.xlu0 %266
      %268 = vrot.lane.b32.xlu0 %v207, 90
      %v269 = vpop.permute.xlu0 %268
      %vm270 = vcmask 736256
      %v271 = vsel %vm270, %v267, %v269
      %vm272 = vcmask 1043456
      %v273 = vsel %vm272, %v205, %v215
      %v274 = vsel %vm272, %v207, %v213
      %v275 = vsel %vm272, %v223, %v231
      %v276 = vsel %vm272, %v221, %v229
      %v277 = vsel %vm272, %v239, %v247
      %v278 = vsel %vm272, %v237, %v245
      %v279 = vsel %vm272, %v255, %v263
      %v280 = vsel %vm272, %v253, %v261
      %v281 = vld [vmem:[%s1] sm:$0xff]
      %v282 = vld [vmem:[%s2] sm:$0xff]
      %284 = vset.pattern.permute.xlu0 0
      %285 = vperm.xlu0 %284, %v282
      %v286 = vpop.permute.xlu0 %285
      %vm288 = vcmask 293888
      %v290 = vsel %vm288, %v281, 0
      %v292 = vsel %vm272, %v271, 0
      %v294 = vsel %vm272, %v269, 0
      %296 = vmatprep.subr.mxu0 %v274
      %297 = vmatpush1.msra.mxu0 %v273
      %298 = vmatprep.subr.mxu0 %v276
      %299 = vmatpush1.msra.mxu0 %v275
      %300 = vmatprep.subr.mxu0 %v278
      %301 = vmatpush1.msra.mxu0 %v277
      %302 = vmatprep.subr.mxu0 %v280
      %303 = vmatpush1.msra.mxu0 %v279
      %304 = vmatprep.subr.mxu0 %v294
      %305 = vmatpush1.msra.mxu0 %v292
      %306 = vmatprep.subr.mxu0 0.0
      %307 = vmatpush1.msra.mxu0 0.0
      %308 = vmatprep.subr.mxu0 0.0
      %309 = vmatpush1.msra.mxu0 0.0
      %310 = vmatprep.subr.mxu0 0.0
      %311 = vmatpush1.msra.mxu0 0.0
      %312 = vmatprep.subr.mxu0 0.0
      %313 = vmatpush1.msra.mxu0 0.0
      %314 = vmatprep.subr.mxu0 0.0
      %315 = vmatpush1.msra.mxu0 0.0
      %316 = vmatprep.subr.mxu0 0.0
      %317 = vmatpush1.msra.mxu0 0.0
      %318 = vmatprep.subr.mxu0 0.0
      %319 = vmatpush1.msra.mxu0 0.0
      %320 = vmatprep.subr.mxu0 0.0
      %321 = vmatpush1.msra.mxu0 0.0
      %322 = vmatprep.subr.mxu0 0.0
      %323 = vmatpush1.msra.mxu0 0.0
      %324 = vmatprep.subr.mxu0 0.0
      %325 = vmatpush1.msra.mxu0 0.0
      %326 = vmatprep.subr.mxu0 0.0
      %327 = vmatpush1.msra.mxu0 0.0
      %328 = vmatprep.subr.mxu0 0.0
      %329 = vmatpush1.msra.mxu0 0.0
      %330 = vmatprep.subr.mxu0 0.0
      %331 = vmatpush1.msra.mxu0 0.0
      %332 = vmatprep.subr.mxu0 0.0
      %333 = vmatpush1.msra.mxu0 0.0
      %334 = vmatprep.subr.mxu0 0.0
      %335 = vmatpush1.msra.mxu0 0.0
      %336 = vmatprep.subr.mxu0 0.0
      %337 = vmatpush1.msra.mxu0 0.0
      %338 = vmatprep.subr.mxu0 0.0
      %339 = vmatpush1.msra.mxu0 0.0
      %340 = vmatprep.subr.mxu0 0.0
      %341 = vmatpush1.msra.mxu0 0.0
      %342 = vmatprep.subr.mxu0 0.0
      %343 = vmatpush1.msra.mxu0 0.0
      %344 = vmatprep.subr.mxu0 0.0
      %345 = vmatpush1.msra.mxu0 0.0
      %346 = vmatprep.subr.mxu0 0.0
      %347 = vmatpush1.msra.mxu0 0.0
      %348 = vmatprep.subr.mxu0 0.0
      %349 = vmatpush1.msra.mxu0 0.0
      %350 = vmatprep.subr.mxu0 0.0
      %351 = vmatpush1.msra.mxu0 0.0
      %352 = vmatprep.subr.mxu0 0.0
      %353 = vmatpush1.msra.mxu0 0.0
      %354 = vmatprep.subr.mxu0 0.0
      %355 = vmatpush1.msra.mxu0 0.0
      %356 = vmatprep.subr.mxu0 0.0
      %357 = vmatpush1.msra.mxu0 0.0
      %358 = vmatprep.subr.mxu0 0.0
      %359 = vmatpush1.msra.mxu0 0.0
      %360 = vmatprep.mubr.f32.mxu0 0.0
      %361 = vmatmul.mubr.f32.gmra.mrb[0].mxu0 %v290
      %v362 = vpop.f32.mrb[0].mxu0
      %v363 = vadd.f32 %v286, %v362
      %v364 = vpop.f32.mrb[0].mxu0
      %v365 = vadd.f32 %v286, %v364
      %366 = vdwg.mxu0
      %vm367 = vcmp.gt.f32.partialorder %v363, 0.0
      %vm368 = vcmp.gt.f32.partialorder %v365, 0.0
      %v369 = vmul.f32 %v363, 0.1
      %v370 = vmul.f32 %v365, 0.1
      %v371 = vsel %vm367, %v363, %v369
      %v372 = vsel %vm368, %v365, %v370
      %374 = vrot.lane.b32.xlu0 %v371, 110
      %v375 = vpop.permute.xlu0 %374
      %377 = vrot.lane.b32.xlu0 %v371, 92
      %v378 = vpop.permute.xlu0 %377
      %380 = vrot.lane.b32.xlu0 %v371, 74
      %v381 = vpop.permute.xlu0 %380
      %383 = vrot.lane.b32.xlu0 %v371, 56
      %v384 = vpop.permute.xlu0 %383
      %386 = vrot.lane.b32.xlu0 %v371, 38
      %v387 = vpop.permute.xlu0 %386
      %389 = vrot.lane.b32.xlu0 %v371, 20
      %v390 = vpop.permute.xlu0 %389
      %393 = vrot.lane.b32.xlu0 %v371, 2
      %v394 = vpop.permute.xlu0 %393
      %395 = vrot.lane.b32.xlu0 %v372, 2
      %v396 = vpop.permute.xlu0 %395
      %vm397 = vcmask 15360
      %v398 = vsel %vm397, %v394, %v396
      %v400 = vcombine.low %v371, %v378
      %v401 = vcombine.high %v371, %v378
      %v403 = vunpack.c.l.s4 1983009808
      %v404 = vunpack.c.0.s8 %v403
      %v405 = vlaneseq
      %v406 = vshrl.u32 %v405, 7
      %v407 = vsub.s32 %v404, %v406
      %v408 = vrot.slane %v400, %v407
      %v410 = vunpack.c.l.s4 1983009808
      %v411 = vunpack.c.0.s8 %v410
      %v412 = vlaneseq
      %v413 = vshrl.u32 %v412, 7
      %v414 = vsub.s32 %v411, %v413
      %v415 = vrot.slane %v401, %v414
      %v416 = vcombine.low %v375, %v381
      %v417 = vcombine.high %v375, %v381
      %v419 = vunpack.c.l.s4 1983009808
      %v420 = vunpack.c.0.s8 %v419
      %v421 = vlaneseq
      %v422 = vshrl.u32 %v421, 7
      %v423 = vsub.s32 %v420, %v422
      %v424 = vrot.slane %v416, %v423
      %v426 = vunpack.c.l.s4 1983009808
      %v427 = vunpack.c.0.s8 %v426
      %v428 = vlaneseq
      %v429 = vshrl.u32 %v428, 7
      %v430 = vsub.s32 %v427, %v429
      %v431 = vrot.slane %v417, %v430
      %v432 = vcombine.low %v384, %v390
      %v433 = vcombine.high %v384, %v390
      %v435 = vunpack.c.l.s4 1983009808
      %v436 = vunpack.c.0.s8 %v435
      %v437 = vlaneseq
      %v438 = vshrl.u32 %v437, 7
      %v439 = vsub.s32 %v436, %v438
      %v440 = vrot.slane %v432, %v439
      %v442 = vunpack.c.l.s4 1983009808
      %v443 = vunpack.c.0.s8 %v442
      %v444 = vlaneseq
      %v445 = vshrl.u32 %v444, 7
      %v446 = vsub.s32 %v443, %v445
      %v447 = vrot.slane %v433, %v446
      %v448 = vcombine.low %v387, %v398
      %v449 = vcombine.high %v387, %v398
      %v451 = vunpack.c.l.s4 1983009808
      %v452 = vunpack.c.0.s8 %v451
      %v453 = vlaneseq
      %v454 = vshrl.u32 %v453, 7
      %v455 = vsub.s32 %v452, %v454
      %v456 = vrot.slane %v448, %v455
      %v458 = vunpack.c.l.s4 1983009808
      %v459 = vunpack.c.0.s8 %v458
      %v460 = vlaneseq
      %v461 = vshrl.u32 %v460, 7
      %v462 = vsub.s32 %v459, %v461
      %v463 = vrot.slane %v449, %v462
      %v464 = vcombine.low %v408, %v424
      %v465 = vcombine.high %v408, %v424
      %v467 = vunpack.c.l.s4 1934713408
      %v468 = vunpack.c.0.s8 %v467
      %v469 = vlaneseq
      %v470 = vshrl.u32 %v469, 7
      %v471 = vsub.s32 %v468, %v470
      %v472 = vrot.slane %v464, %v471
      %v474 = vunpack.c.l.s4 1934713408
      %v475 = vunpack.c.0.s8 %v474
      %v476 = vlaneseq
      %v477 = vshrl.u32 %v476, 7
      %v478 = vsub.s32 %v475, %v477
      %v479 = vrot.slane %v465, %v478
      %v480 = vcombine.low %v415, %v431
      %v481 = vcombine.high %v415, %v431
      %v483 = vunpack.c.l.s4 1934713408
      %v484 = vunpack.c.0.s8 %v483
      %v485 = vlaneseq
      %v486 = vshrl.u32 %v485, 7
      %v487 = vsub.s32 %v484, %v486
      %v488 = vrot.slane %v480, %v487
      %v490 = vunpack.c.l.s4 1934713408
      %v491 = vunpack.c.0.s8 %v490
      %v492 = vlaneseq
      %v493 = vshrl.u32 %v492, 7
      %v494 = vsub.s32 %v491, %v493
      %v495 = vrot.slane %v481, %v494
      %v496 = vcombine.low %v440, %v456
      %v497 = vcombine.high %v440, %v456
      %v499 = vunpack.c.l.s4 1934713408
      %v500 = vunpack.c.0.s8 %v499
      %v501 = vlaneseq
      %v502 = vshrl.u32 %v501, 7
      %v503 = vsub.s32 %v500, %v502
      %v504 = vrot.slane %v496, %v503
      %v506 = vunpack.c.l.s4 1934713408
      %v507 = vunpack.c.0.s8 %v506
      %v508 = vlaneseq
      %v509 = vshrl.u32 %v508, 7
      %v510 = vsub.s32 %v507, %v509
      %v511 = vrot.slane %v497, %v510
      %v512 = vcombine.low %v447, %v463
      %v513 = vcombine.high %v447, %v463
      %v515 = vunpack.c.l.s4 1934713408
      %v516 = vunpack.c.0.s8 %v515
      %v517 = vlaneseq
      %v518 = vshrl.u32 %v517, 7
      %v519 = vsub.s32 %v516, %v518
      %v520 = vrot.slane %v512, %v519
      %v522 = vunpack.c.l.s4 1934713408
      %v523 = vunpack.c.0.s8 %v522
      %v524 = vlaneseq
      %v525 = vshrl.u32 %v524, 7
      %v526 = vsub.s32 %v523, %v525
      %v527 = vrot.slane %v513, %v526
      %v528 = vcombine.low %v472, %v504
      %v529 = vcombine.high %v472, %v504
      %v530 = vcombine.low %v479, %v511
      %v531 = vcombine.high %v479, %v511
      %v532 = vcombine.low %v488, %v520
      %v533 = vcombine.high %v488, %v520
      %v534 = vcombine.low %v495, %v527
      %v535 = vcombine.high %v495, %v527
      %v536 = vcombine.low %v528, %v530
      %v537 = vcombine.high %v528, %v530
      %v539 = vunpack.c.l.s4 1983009808
      %v540 = vunpack.c.0.s8 %v539
      %v541 = vlaneseq
      %v542 = vshrl.u32 %v541, 7
      %v543 = vsub.s32 %v540, %v542
      %v544 = vrot.slane %v536, %v543
      %v546 = vunpack.c.l.s4 1983009808
      %v547 = vunpack.c.0.s8 %v546
      %v548 = vlaneseq
      %v549 = vshrl.u32 %v548, 7
      %v550 = vsub.s32 %v547, %v549
      %v551 = vrot.slane %v537, %v550
      %v552 = vcombine.low %v529, %v531
      %v553 = vcombine.high %v529, %v531
      %v555 = vunpack.c.l.s4 1983009808
      %v556 = vunpack.c.0.s8 %v555
      %v557 = vlaneseq
      %v558 = vshrl.u32 %v557, 7
      %v559 = vsub.s32 %v556, %v558
      %v560 = vrot.slane %v552, %v559
      %v562 = vunpack.c.l.s4 1983009808
      %v563 = vunpack.c.0.s8 %v562
      %v564 = vlaneseq
      %v565 = vshrl.u32 %v564, 7
      %v566 = vsub.s32 %v563, %v565
      %v567 = vrot.slane %v553, %v566
      %v568 = vcombine.low %v532, %v534
      %v569 = vcombine.high %v532, %v534
      %v571 = vunpack.c.l.s4 1983009808
      %v572 = vunpack.c.0.s8 %v571
      %v573 = vlaneseq
      %v574 = vshrl.u32 %v573, 7
      %v575 = vsub.s32 %v572, %v574
      %v576 = vrot.slane %v568, %v575
      %v578 = vunpack.c.l.s4 1983009808
      %v579 = vunpack.c.0.s8 %v578
      %v580 = vlaneseq
      %v581 = vshrl.u32 %v580, 7
      %v582 = vsub.s32 %v579, %v581
      %v583 = vrot.slane %v569, %v582
      %v584 = vcombine.low %v533, %v535
      %v585 = vcombine.high %v533, %v535
      %v587 = vunpack.c.l.s4 1983009808
      %v588 = vunpack.c.0.s8 %v587
      %v589 = vlaneseq
      %v590 = vshrl.u32 %v589, 7
      %v591 = vsub.s32 %v588, %v590
      %v592 = vrot.slane %v584, %v591
      %v594 = vunpack.c.l.s4 1983009808
      %v595 = vunpack.c.0.s8 %v594
      %v596 = vlaneseq
      %v597 = vshrl.u32 %v596, 7
      %v598 = vsub.s32 %v595, %v597
      %v599 = vrot.slane %v585, %v598
      %v600 = vcombine.low %v544, %v560
      %v601 = vcombine.high %v544, %v560
      %v603 = vunpack.c.l.s4 1934713408
      %v604 = vunpack.c.0.s8 %v603
      %v605 = vlaneseq
      %v606 = vshrl.u32 %v605, 7
      %v607 = vsub.s32 %v604, %v606
      %v608 = vrot.slane %v600, %v607
      %v610 = vunpack.c.l.s4 1934713408
      %v611 = vunpack.c.0.s8 %v610
      %v612 = vlaneseq
      %v613 = vshrl.u32 %v612, 7
      %v614 = vsub.s32 %v611, %v613
      %v615 = vrot.slane %v601, %v614
      %v616 = vcombine.low %v551, %v567
      %v617 = vcombine.high %v551, %v567
      %v619 = vunpack.c.l.s4 1934713408
      %v620 = vunpack.c.0.s8 %v619
      %v621 = vlaneseq
      %v622 = vshrl.u32 %v621, 7
      %v623 = vsub.s32 %v620, %v622
      %v624 = vrot.slane %v616, %v623
      %v626 = vunpack.c.l.s4 1934713408
      %v627 = vunpack.c.0.s8 %v626
      %v628 = vlaneseq
      %v629 = vshrl.u32 %v628, 7
      %v630 = vsub.s32 %v627, %v629
      %v631 = vrot.slane %v617, %v630
      %v632 = vcombine.low %v576, %v592
      %v633 = vcombine.high %v576, %v592
      %v635 = vunpack.c.l.s4 1934713408
      %v636 = vunpack.c.0.s8 %v635
      %v637 = vlaneseq
      %v638 = vshrl.u32 %v637, 7
      %v639 = vsub.s32 %v636, %v638
      %v640 = vrot.slane %v632, %v639
      %v642 = vunpack.c.l.s4 1934713408
      %v643 = vunpack.c.0.s8 %v642
      %v644 = vlaneseq
      %v645 = vshrl.u32 %v644, 7
      %v646 = vsub.s32 %v643, %v645
      %v647 = vrot.slane %v633, %v646
      %v648 = vcombine.low %v583, %v599
      %v649 = vcombine.high %v583, %v599
      %v651 = vunpack.c.l.s4 1934713408
      %v652 = vunpack.c.0.s8 %v651
      %v653 = vlaneseq
      %v654 = vshrl.u32 %v653, 7
      %v655 = vsub.s32 %v652, %v654
      %v656 = vrot.slane %v648, %v655
      %v658 = vunpack.c.l.s4 1934713408
      %v659 = vunpack.c.0.s8 %v658
      %v660 = vlaneseq
      %v661 = vshrl.u32 %v660, 7
      %v662 = vsub.s32 %v659, %v661
      %v663 = vrot.slane %v649, %v662
      %v664 = vcombine.low %v608, %v640
      %v665 = vcombine.high %v608, %v640
      %v666 = vcombine.low %v615, %v647
      %v667 = vcombine.high %v615, %v647
      %v668 = vcombine.low %v624, %v656
      %v669 = vcombine.high %v624, %v656
      %v670 = vcombine.low %v631, %v663
      %v671 = vcombine.high %v631, %v663
      %673 = vrot.lane.b32.xlu0 %v665, 16
      %v674 = vpop.permute.xlu0 %673
      %677 = vrot.lane.b32.xlu0 %v666, 32
      %v678 = vpop.permute.xlu0 %677
      %681 = vrot.lane.b32.xlu0 %v667, 48
      %v682 = vpop.permute.xlu0 %681
      %685 = vrot.lane.b32.xlu0 %v668, 64
      %v686 = vpop.permute.xlu0 %685
      %689 = vrot.lane.b32.xlu0 %v669, 80
      %v690 = vpop.permute.xlu0 %689
      %693 = vrot.lane.b32.xlu0 %v670, 96
      %v694 = vpop.permute.xlu0 %693
      %697 = vrot.lane.b32.xlu0 %v671, 112
      %v698 = vpop.permute.xlu0 %697
      %vm700 = vcmask 130048
      %v701 = vsel %vm700, %v664, %v674
      %vm702 = vcmask 261120
      %v703 = vsel %vm702, %v701, %v678
      %vm704 = vcmask 392192
      %v705 = vsel %vm704, %v703, %v682
      %vm706 = vcmask 523264
      %v707 = vsel %vm706, %v705, %v686
      %vm708 = vcmask 654336
      %v709 = vsel %vm708, %v707, %v690
      %vm710 = vcmask 785408
      %v711 = vsel %vm710, %v709, %v694
      %vm712 = vcmask 916480
      %v713 = vsel %vm712, %v711, %v698
      %714 = vst [vmem:[%s204] sm:$0xff] %v713
      %p715 = scmp.lt.s32.totalorder %s18, 1
      %s716 = scalar_select %p715, %s18, 1
      %p717 = scmp.lt.s32.totalorder %s19, 1
      %s718 = scalar_select %p717, %s19, 1
      %s719 = smul.addr %s716, 2
      %s720 = sadd.s32 %s718, %s719
      %s721 = smul.addr %s720, 8
      %s722 = scalar_lea.vmem %s3, %s721
      // Predicated region
      $region33: #{conv_bn_lrelu.1} parent=31 // pred_check
        %p723 = pneg %p116
      $region34: #{conv_bn_lrelu.1} parent=31 // pred_check_branch
        %725 = sbr.rel (%p723) target = $region36
      $region35: #{conv_bn_lrelu.1} parent=31 // pred_region
        _
      $region36: #{conv_bn_lrelu.1} parent=31 // pred_fallthru
        _
    $region32: #{conv_bn_lrelu.1} parent=5 // pred_fallthru
      _
    %p726 = scmp.le.s32.totalorder 2, %s9
    // Predicated region
    $region37: #{conv_bn_lrelu.1} parent=5 // pred_check
      %p727 = pneg %p726
    $region38: #{conv_bn_lrelu.1} parent=5 // pred_check_branch
      %729 = sbr.rel (%p727) target = $region40
    $region39: #{conv_bn_lrelu.1} parent=5 // pred_region
      %s730 = ssub.s32 %s9, 2
      // Predicated region
      $region41: #{conv_bn_lrelu.1} parent=39 // pred_check
        %p731 = pneg %p122
      $region42: #{conv_bn_lrelu.1} parent=39 // pred_check_branch
        %733 = sbr.rel (%p731) target = $region44
      $region43: #{conv_bn_lrelu.1} parent=39 // pred_region
        %p734 = scmp.lt.s32.totalorder %s20, 1
        %s735 = scalar_select %p734, %s20, 1
        %p736 = scmp.lt.s32.totalorder %s21, 1
        %s737 = scalar_select %p736, %s21, 1
        %s738 = smul.addr %s735, 2
        %s739 = sadd.s32 %s737, %s738
        %s740 = smul.addr %s739, 8
        %s741 = scalar_lea.vmem %s3, %s740
      $region44: #{conv_bn_lrelu.1} parent=39 // pred_fallthru
        _
    $region40: #{conv_bn_lrelu.1} parent=5 // pred_fallthru
      _
  $region6: #{conv_bn_lrelu.1} parent=0 // loop_footer
    %s13 = sadd.s32 1, %s9
  $region7: #{conv_bn_lrelu.1} parent=0 // loop_footer_branch
    %8 = sbr.rel target = $region3
  $region8: #{conv_bn_lrelu.1} parent=0 // loop_exit
    _

</llo_original>
